<compile_context>
chip_gen: v7x
topology: tpu7x:2x2x1
jax: 0.10.0
libtpu: 0.0.40
codegen_flags: <defaults>
</compile_context>

<pallas_src>
import functools

import jax
import jax.numpy as jnp
from jax.experimental import pallas as pl
from jax.experimental.pallas import tpu as pltpu


def _pick_block_n(n, block_n_max=512):
    """Lane-tile width: multiple of 128, <= block_n_max, >= 2 tiles if possible."""
    n128 = pl.cdiv(n, 128) * 128
    bn = min(block_n_max, n128)
    # v7x has 2 TensorCores; the "parallel" i axis is what gets sharded across
    # them, so prefer at least two tiles when there are enough rows.
    if n128 >= 256 and pl.cdiv(n128, bn) < 2:
        bn = max(128, ((n128 // 2 + 127) // 128) * 128)
    return bn


def prepare_similarity_params(params, *, deep, max_chunk_rows=256, mxu_dtype=None):
    """One-time weight relayout (call at init, not on every forward).

    max_chunk_rows: target chunk*d (MXU output rows per k-step). 256 fills a
      v6e/v7x MXU pass; use 128 on v5e.
    mxu_dtype: optional explicit cast of the bilinear weight fed to the MXU
      (e.g. jnp.bfloat16 on v6e/v7x); default keeps the weight's own dtype.
    """
    W = jnp.asarray(params["bi_w"])             # (out_bi, d, d)  nn.Bilinear.weight
    b = jnp.asarray(params["bi_b"])             # (out_bi,)
    out_bi, d, _ = W.shape
    if not deep:
        assert out_bi == 1, "deep=False implies nn.Bilinear(d, d, 1)"

    # Bounded chunk (chunk*d MXU-output rows per k-step); pad out_bi up to a
    # multiple of it instead of falling back to the full extent.
    chunk = min(out_bi, max(1, max_chunk_rows // d))
    out_pad = pl.cdiv(out_bi, chunk) * chunk
    num_k = out_pad // chunk
    if out_pad != out_bi:                       # zero-pad => padded outputs are 0
        W = jnp.pad(W, ((0, out_pad - out_bi), (0, 0), (0, 0)))
        b = jnp.pad(b, (0, out_pad - out_bi))

    if mxu_dtype is not None:
        W = W.astype(mxu_dtype)
    # w3[k, c*d + j, i] = W[k*chunk + c, i, j]   ->  (chunk*d, d) @ (d, block_n)
    w3 = jnp.transpose(W, (0, 2, 1)).reshape(num_k, chunk * d, d)
    b3 = b.astype(jnp.float32).reshape(num_k, chunk, 1)

    prepared = {"deep": deep, "d": d, "out_bi": out_bi,
                "chunk": chunk, "num_k": num_k, "w3": w3, "b3": b3}
    if deep:
        # torch Linear(d_model, 1).weight is (1, d_model); bias is (1,)
        pw = jnp.asarray(params["proj_w"]).reshape(-1)
        if out_pad != out_bi:
            pw = jnp.pad(pw, (0, out_pad - out_bi))
        prepared["wproj"] = pw.astype(jnp.float32).reshape(num_k, chunk, 1)
        prepared["bproj"] = jnp.asarray(params["proj_b"]).astype(jnp.float32).reshape(1)
    return prepared


def _similarity_kernel(s_ref, p_ref, w_ref, b_ref, *rest,
                       deep, w_resident, hoist_p32):
    if deep:
        if hoist_p32:
            wproj_ref, bproj_ref, o_ref, acc_ref, p32_ref = rest
        else:
            wproj_ref, bproj_ref, o_ref, acc_ref = rest
            p32_ref = None
    else:
        (o_ref,) = rest

    d, block_n = s_ref.shape
    chunk = b_ref.shape[1]
    k = pl.program_id(1)

    def _sel(ref):
        # Resident operands hold all num_k chunks; pick the k-th (static 0 when
        # there is only one chunk, so the tiny-case path stays trivially static).
        return ref[k] if ref.shape[0] > 1 else ref[0]

    if deep:
        @pl.when(k == 0)
        def _init():
            acc_ref[...] = jnp.zeros_like(acc_ref)
            if hoist_p32:
                p32_ref[...] = p_ref[...].astype(jnp.float32)

    # --- bilinear: `chunk` outputs this k-step ------------------------------
    # (chunk*d, d) @ (d, block_n) on the MXU, f32 accumulation.
    w_k = _sel(w_ref) if w_resident else w_ref[0]
    sw = jnp.dot(w_k, s_ref[...], preferred_element_type=jnp.float32)

    if deep and hoist_p32:
        p32 = p32_ref[...]                       # hoisted: converted once per i
    else:
        p32 = p_ref[...].astype(jnp.float32)     # no-op for f32 activations

    # Single middle-axis reduce (no unrolled concat of (1, block_n) partials).
    # NOTE: assumes d % 8 == 0 so the sublane split stays tile-aligned.
    v = jnp.sum(sw.reshape(chunk, d, block_n) * p32[None], axis=1) + _sel(b_ref)

    if deep:
        h = jnp.tanh(v)                                                  # EUP
        # partial Linear(d_model, 1): sum_c wproj[k, c] * h[c, :]
        acc_ref[...] += jnp.sum(h * _sel(wproj_ref), axis=0, keepdims=True)

        @pl.when(k == pl.num_programs(1) - 1)
        def _finalize():
            o_ref[0] = (acc_ref[...] + bproj_ref[0]).astype(o_ref.dtype)
    else:
        # deep=False => out_bi == 1 => chunk == 1, single k-step.
        o_ref[0] = v.astype(o_ref.dtype)


def similarity_forward(svecs, pvecs, prepared, *, block_n_max=512,
                       w_resident_budget_bytes=12 * 1024 * 1024):
    """Pallas implementation of Similarity.forward(svecs, pvecs) -> (N, 1)."""
    N, d = svecs.shape
    deep = prepared["deep"]
    chunk, num_k = prepared["chunk"], prepared["num_k"]
    w3, b3 = prepared["w3"], prepared["b3"]
    assert d == prepared["d"]

    block_n = _pick_block_n(N, block_n_max)
    n_pad = pl.cdiv(N, block_n) * block_n
    if n_pad != N:
        pad = ((0, n_pad - N), (0, 0))
        svecs = jnp.pad(svecs, pad)
        pvecs = jnp.pad(pvecs, pad)
    num_i = n_pad // block_n

    st = svecs.T                                  # (d, n_pad), batch on lanes
    pt = pvecs.T

    w_bytes = w3.size * w3.dtype.itemsize
    w_resident = w_bytes <= w_resident_budget_bytes
    hoist_p32 = bool(deep and num_k > 1 and pt.dtype != jnp.float32)

    in_specs = [
        pl.BlockSpec((d, block_n), lambda i, k: (0, i)),        # sT tile
        pl.BlockSpec((d, block_n), lambda i, k: (0, i)),        # pT tile
    ]
    if w_resident:
        # Whole W stays VMEM-resident for the whole grid (DMA'd once).
        in_specs.append(pl.BlockSpec((num_k, chunk * d, d), lambda i, k: (0, 0, 0)))
    else:
        # Streamed chunk-by-chunk; 3 buffers hide the DMA under the short step.
        in_specs.append(pl.BlockSpec((1, chunk * d, d), lambda i, k: (k, 0, 0),
                                     pipeline_mode=pl.Buffered(3)))
    in_specs.append(pl.BlockSpec((num_k, chunk, 1), lambda i, k: (0, 0, 0)))  # bias, resident

    args = [st, pt, w3, b3]
    scratch = []
    if deep:
        args += [prepared["wproj"], prepared["bproj"]]
        in_specs += [
            pl.BlockSpec((num_k, chunk, 1), lambda i, k: (0, 0, 0)),   # proj w, resident
            pl.BlockSpec(memory_space=pltpu.MemorySpace.SMEM),         # proj bias scalar
        ]
        scratch.append(pltpu.VMEM((1, block_n), jnp.float32))          # running sum
        if hoist_p32:
            scratch.append(pltpu.VMEM((d, block_n), jnp.float32))      # hoisted f32 p tile

    # VMEM budget: double-buffered activation tiles + weight buffers + f32 sw
    # slab + scratch, clamped to [32, 48] MiB (v7x physical VMEM is 64 MiB/TC).
    act_b = 2 * 2 * d * block_n * st.dtype.itemsize
    w_buf_b = 2 * w_bytes if w_resident else 3 * chunk * d * d * w3.dtype.itemsize
    slab_b = 3 * chunk * d * block_n * 4
    scr_b = (1 + (d if hoist_p32 else 0)) * block_n * 4 + 4 * block_n * 4
    est = act_b + w_buf_b + slab_b + scr_b + (2 << 20)
    vmem_limit = int(min(48 * 1024 * 1024, max(32 * 1024 * 1024, 2 * est)))

    kernel = functools.partial(_similarity_kernel, deep=deep,
                               w_resident=w_resident, hoist_p32=hoist_p32)
    out = pl.pallas_call(
        kernel,
        out_shape=jax.ShapeDtypeStruct((num_i, 1, block_n), jnp.float32),
        grid=(num_i, num_k),
        in_specs=in_specs,
        out_specs=pl.BlockSpec((1, 1, block_n), lambda i, k: (i, 0, 0)),
        scratch_shapes=scratch,
        compiler_params=pltpu.CompilerParams(
            dimension_semantics=("parallel", "arbitrary"),
            vmem_limit_bytes=vmem_limit,
        ),
    )(*args)

    # (num_i, 1, block_n) lane-dense slab -> (N, 1)
    return out.reshape(n_pad)[:N].reshape(N, 1)


def _reference(svecs, pvecs, params, *, deep):
    W, b = params["bi_w"], params["bi_b"]
    v = jnp.einsum("ni,kij,nj->nk", svecs, W, pvecs) + b
    if not deep:
        return v
    h = jnp.tanh(v)
    return h @ params["proj_w"].T + params["proj_b"].reshape(1, 1)


if __name__ == "__main__":
    # Small shapes consistent with the module: seq N=8, d_model=32.
    N, d_model = 8, 32

    key = jax.random.PRNGKey(0)
    k_s, k_p, k_w, k_b, k_pw, k_pb = jax.random.split(key, 6)

    svecs = jax.random.normal(k_s, (N, d_model), jnp.float32)
    pvecs = jax.random.normal(k_p, (N, d_model), jnp.float32)
    scale = 1.0 / jnp.sqrt(jnp.float32(d_model))

    def make_params(out_bi):
        return {
            "bi_w": jax.random.uniform(k_w, (out_bi, d_model, d_model),
                                       jnp.float32, -scale, scale),
            "bi_b": jax.random.uniform(k_b, (out_bi,), jnp.float32, -scale, scale),
            "proj_w": jax.random.uniform(k_pw, (1, d_model), jnp.float32, -scale, scale),
            "proj_b": jax.random.uniform(k_pb, (1,), jnp.float32, -scale, scale),
        }

    for deep in (True, False):
        out_bi = d_model if deep else 1
        params = make_params(out_bi)

        prepared = prepare_similarity_params(params, deep=deep)   # one-time relayout
        out = jax.block_until_ready(similarity_forward(svecs, pvecs, prepared))
        ref = jax.block_until_ready(_reference(svecs, pvecs, params, deep=deep))

        assert out.shape == (N, 1), out.shape
        err = jnp.max(jnp.abs(out - ref))
        assert jnp.allclose(out, ref, atol=1e-3, rtol=1e-3), (
            f"mismatch vs reference (deep={deep}): max abs err {err}")

    print("KERNEL_OK")
</pallas_src>

<mosaic_0001>
module attributes {stable_mosaic.version = 11 : i64} {
  func.func @_similarity_kernel(%arg0: i32, %arg1: i32, %arg2: memref<32x128xf32, #tpu.memory_space<vmem>>, %arg3: memref<32x128xf32, #tpu.memory_space<vmem>>, %arg4: memref<4x256x32xf32, #tpu.memory_space<vmem>>, %arg5: memref<4x8x1xf32, #tpu.memory_space<vmem>>, %arg6: memref<4x8x1xf32, #tpu.memory_space<vmem>>, %arg7: memref<1xf32, #tpu.memory_space<smem>>, %arg8: memref<1x1x128xf32, #tpu.memory_space<vmem>>, %arg9: memref<1x128xf32, #tpu.memory_space<vmem>>) attributes {dimension_semantics = [#tpu.dimension_semantics<parallel>, #tpu.dimension_semantics<arbitrary>], iteration_bounds = array<i64: 1, 4>, scalar_prefetch = 0 : i64, scratch_operands = 1 : i64, tpu.core_type = #tpu.core_type<tc>, window_params = [{transform_indices = @transform_0, window_bounds = array<i64: 32, 128>}, {transform_indices = @transform_1, window_bounds = array<i64: 32, 128>}, {pipeline_mode = #tpu.pipeline_mode<synchronous>, transform_indices = @transform_2, window_bounds = array<i64: 4, 256, 32>}, {pipeline_mode = #tpu.pipeline_mode<synchronous>, transform_indices = @transform_3, window_bounds = array<i64: 4, 8, 1>}, {pipeline_mode = #tpu.pipeline_mode<synchronous>, transform_indices = @transform_4, window_bounds = array<i64: 4, 8, 1>}, {transform_indices = @transform_5, window_bounds = array<i64: 1>}, {transform_indices = @transform_6, window_bounds = array<i64: 1, 1, 128>}]} {
    %c0_i32 = arith.constant 0 : i32
    %0 = arith.cmpi eq, %arg1, %c0_i32 : i32
    %1 = arith.extui %0 : i1 to i32
    %c0_i32_0 = arith.constant 0 : i32
    %2 = arith.cmpi ne, %1, %c0_i32_0 : i32
    scf.if %2 {
      %cst_17 = arith.constant 0.000000e+00 : f32
      %33 = vector.broadcast %cst_17 : f32 to vector<1x128xf32>
      %c0_18 = arith.constant 0 : index
      %c0_19 = arith.constant 0 : index
      %34 = vector.load %arg9[%c0_18, %c0_19] : memref<1x128xf32, #tpu.memory_space<vmem>>, vector<1x128xf32>
      tpu.vector_store %arg9[%c0_18, %c0_19], %33 {strides = array<i32>} : memref<1x128xf32, #tpu.memory_space<vmem>>, vector<1x128xf32>,
    } else {
    }
    %3 = arith.index_cast %arg1 : i32 to index
    %c0 = arith.constant 0 : index
    %c0_1 = arith.constant 0 : index
    %4 = vector.load %arg4[%3, %c0, %c0_1] : memref<4x256x32xf32, #tpu.memory_space<vmem>>, vector<1x256x32xf32>
    %5 = vector.shape_cast %4 : vector<1x256x32xf32> to vector<256x32xf32>
    %c0_2 = arith.constant 0 : index
    %c0_3 = arith.constant 0 : index
    %6 = vector.load %arg2[%c0_2, %c0_3] : memref<32x128xf32, #tpu.memory_space<vmem>>, vector<32x128xf32>
    %cst = arith.constant dense<0.000000e+00> : vector<256x128xf32>
    %7 = tpu.matmul %5, %6, %cst {dimension_numbers = #tpu.dot_dimension_numbers<[1], [0], [0], [1], [0, 0, 1, 1], [], []>} : vector<256x32xf32>, vector<32x128xf32>, vector<256x128xf32> -> vector<256x128xf32>
    %c0_4 = arith.constant 0 : index
    %c0_5 = arith.constant 0 : index
    %8 = vector.load %arg3[%c0_4, %c0_5] : memref<32x128xf32, #tpu.memory_space<vmem>>, vector<32x128xf32>
    %9 = vector.shape_cast %7 : vector<256x128xf32> to vector<8x32x128xf32>
    %10 = vector.shape_cast %8 : vector<32x128xf32> to vector<1x32x128xf32>
    %11 = vector.broadcast %10 : vector<1x32x128xf32> to vector<8x32x128xf32>
    %12 = arith.mulf %9, %11 : vector<8x32x128xf32>
    %cst_6 = arith.constant dense<0.000000e+00> : vector<8x128xf32>
    %13 = vector.multi_reduction <add>, %12, %cst_6 [1] : vector<8x32x128xf32> to vector<8x128xf32>
    %14 = arith.index_cast %arg1 : i32 to index
    %c0_7 = arith.constant 0 : index
    %c0_8 = arith.constant 0 : index
    %15 = vector.load %arg5[%14, %c0_7, %c0_8] : memref<4x8x1xf32, #tpu.memory_space<vmem>>, vector<1x8x1xf32>
    %16 = vector.shape_cast %15 : vector<1x8x1xf32> to vector<8x1xf32>
    %17 = vector.broadcast %16 : vector<8x1xf32> to vector<8x128xf32>
    %18 = arith.addf %13, %17 : vector<8x128xf32>
    %19 = math.tanh %18 : vector<8x128xf32>
    %c0_9 = arith.constant 0 : index
    %c0_10 = arith.constant 0 : index
    %20 = vector.load %arg9[%c0_9, %c0_10] : memref<1x128xf32, #tpu.memory_space<vmem>>, vector<1x128xf32>
    %21 = arith.index_cast %arg1 : i32 to index
    %c0_11 = arith.constant 0 : index
    %c0_12 = arith.constant 0 : index
    %22 = vector.load %arg6[%21, %c0_11, %c0_12] : memref<4x8x1xf32, #tpu.memory_space<vmem>>, vector<1x8x1xf32>
    %23 = vector.shape_cast %22 : vector<1x8x1xf32> to vector<8x1xf32>
    %24 = vector.broadcast %23 : vector<8x1xf32> to vector<8x128xf32>
    %25 = arith.mulf %19, %24 : vector<8x128xf32>
    %cst_13 = arith.constant dense<0.000000e+00> : vector<128xf32>
    %26 = vector.multi_reduction <add>, %25, %cst_13 [0] : vector<8x128xf32> to vector<128xf32>
    %27 = vector.shape_cast %26 : vector<128xf32> to vector<1x128xf32>
    %28 = arith.addf %20, %27 : vector<1x128xf32>
    %c0_14 = arith.constant 0 : index
    %c0_15 = arith.constant 0 : index
    %29 = vector.load %arg9[%c0_14, %c0_15] : memref<1x128xf32, #tpu.memory_space<vmem>>, vector<1x128xf32>
    tpu.vector_store %arg9[%c0_14, %c0_15], %28 {strides = array<i32>} : memref<1x128xf32, #tpu.memory_space<vmem>>, vector<1x128xf32>,
    %c3_i32 = arith.constant 3 : i32
    %30 = arith.cmpi eq, %arg1, %c3_i32 : i32
    %31 = arith.extui %30 : i1 to i32
    %c0_i32_16 = arith.constant 0 : i32
    %32 = arith.cmpi ne, %31, %c0_i32_16 : i32
    scf.if %32 {
      %c0_17 = arith.constant 0 : index
      %c0_18 = arith.constant 0 : index
      %33 = vector.load %arg9[%c0_17, %c0_18] : memref<1x128xf32, #tpu.memory_space<vmem>>, vector<1x128xf32>
      %c0_19 = arith.constant 0 : index
      %34 = memref.load %arg7[%c0_19] : memref<1xf32, #tpu.memory_space<smem>>
      %35 = vector.broadcast %34 : f32 to vector<1x128xf32>
      %36 = arith.addf %33, %35 : vector<1x128xf32>
      %c0_20 = arith.constant 0 : index
      %c0_21 = arith.constant 0 : index
      %c0_22 = arith.constant 0 : index
      %37 = vector.load %arg8[%c0_20, %c0_21, %c0_22] : memref<1x1x128xf32, #tpu.memory_space<vmem>>, vector<1x1x128xf32>
      %38 = vector.shape_cast %37 : vector<1x1x128xf32> to vector<1x128xf32>
      %39 = vector.shape_cast %36 : vector<1x128xf32> to vector<1x1x128xf32>
      tpu.vector_store %arg8[%c0_20, %c0_21, %c0_22], %39 {strides = array<i32>} : memref<1x1x128xf32, #tpu.memory_space<vmem>>, vector<1x1x128xf32>,
    } else {
    }
    return
  }
  func.func @transform_0(%arg0: i32, %arg1: i32) -> (i32, i32) {
    %c0_i32 = arith.constant 0 : i32
    %c0_i32_0 = arith.constant 0 : i32
    return %c0_i32, %arg0 : i32, i32
  }
  func.func @transform_1(%arg0: i32, %arg1: i32) -> (i32, i32) {
    %c0_i32 = arith.constant 0 : i32
    %c0_i32_0 = arith.constant 0 : i32
    return %c0_i32, %arg0 : i32, i32
  }
  func.func @transform_2(%arg0: i32, %arg1: i32) -> (i32, i32, i32) {
    %c0_i32 = arith.constant 0 : i32
    %c0_i32_0 = arith.constant 0 : i32
    %c0_i32_1 = arith.constant 0 : i32
    %c0_i32_2 = arith.constant 0 : i32
    return %c0_i32, %c0_i32_0, %c0_i32_1 : i32, i32, i32
  }
  func.func @transform_3(%arg0: i32, %arg1: i32) -> (i32, i32, i32) {
    %c0_i32 = arith.constant 0 : i32
    %c0_i32_0 = arith.constant 0 : i32
    %c0_i32_1 = arith.constant 0 : i32
    %c0_i32_2 = arith.constant 0 : i32
    return %c0_i32, %c0_i32_0, %c0_i32_1 : i32, i32, i32
  }
  func.func @transform_4(%arg0: i32, %arg1: i32) -> (i32, i32, i32) {
    %c0_i32 = arith.constant 0 : i32
    %c0_i32_0 = arith.constant 0 : i32
    %c0_i32_1 = arith.constant 0 : i32
    %c0_i32_2 = arith.constant 0 : i32
    return %c0_i32, %c0_i32_0, %c0_i32_1 : i32, i32, i32
  }
  func.func @transform_5(%arg0: i32, %arg1: i32) -> i32 {
    %c0_i32 = arith.constant 0 : i32
    %c0_i32_0 = arith.constant 0 : i32
    return %c0_i32 : i32
  }
  func.func @transform_6(%arg0: i32, %arg1: i32) -> (i32, i32, i32) {
    %c0_i32 = arith.constant 0 : i32
    %c0_i32_0 = arith.constant 0 : i32
    %c0_i32_1 = arith.constant 0 : i32
    return %arg0, %c0_i32, %c0_i32_0 : i32, i32, i32
  }
}

</mosaic_0001>

<llo_original>
// kernel: tpu_custom_call.1
$region0: #{tpu_custom_call.1}
  #allocation0 [shape = 'u32[]', space=smem, size = 0x4, offset = 0x4, fixed_abs, tag = 'smem constant byte address 0x4 - core index']
  #allocation1 [shape = 'u32[144,128]{1,0:T(1,128)}', space=vmem, size = 0x12000, scoped, tag = 'internal scratch']
  #allocation2 [shape = 'f32[1,128]{1,0:T(1,128)}', space=vmem, size = 0x200, scoped, tag = 'scratch operand']
  #allocation3 [shape = 'f32[1]{0:T(128)S(6)}', space=smem, size = 0x200, scoped, tag = 'scoped memory for tpu_custom_call.1']
  %s0 = inlined_call_operand.vmem [shape: f32[32,128], index: 0, kind: input, shape index: {}]
  %s1 = inlined_call_operand.vmem [shape: f32[32,128], index: 1, kind: input, shape index: {}]
  %s2 = inlined_call_operand.vmem [shape: f32[4,256,32], index: 2, kind: input, shape index: {}]
  %s3 = inlined_call_operand.vmem [shape: f32[4,8,1], index: 3, kind: input, shape index: {}]
  %s4 = inlined_call_operand.vmem [shape: f32[4,8,1], index: 4, kind: input, shape index: {}]
  %s5 = inlined_call_operand.<no memory space> [shape: f32[1], index: 5, kind: input, shape index: {}]
  %s6 = inlined_call_operand.hbm [shape: f32[1,1,128], index: 6, kind: output, shape index: {}]
  %s7 = sld [smem:[#allocation0]]
  $region65: #{tpu_custom_call.1} parent=0
    _
  %s9 = ssub.s32 1, %s7
  %s10 = scalar_select 0, %s9, %s7
  %11 = sst [smem:[#allocation3]] %s5
  $region1: #{tpu_custom_call.1} parent=0
    #allocation4 [shape = 'u8[512]{0}', space=vmem, size = 0x400, scoped, tag = 'output window, operand 0, single buffered']
    #allocation5 [shape = 's32[2]{0}', space=sflag, size = 0x8, scoped, tag = 'scoped memory for tpu_custom_call.1']
    %12 = vsyncpa [#allocation5], 0
    loop: start=0, step=1, limit=6
    $region2: #{tpu_custom_call.1} parent=1 // loop_pre_header
      _
    $region3: #{tpu_custom_call.1} parent=1 // loop_header
      %s14 = sphi 0, %s18
      %p15 = scmp.ge.s32.totalorder %s14, 6
      %s21 = sphi 0, %s33
      %s22 = sphi 0, %s29
      %s23 = sphi 0, %s21
      %s24 = sphi 0, %s22
      %s25 = sphi 0, %s23
      %s26 = sphi 0, %s24
      %s36 = sphi 0, %s38
      %s39 = sphi 0, %s36
      %s40 = sphi 0, %s39
      %s56 = sphi 0, %s40
      %s62 = sphi 0, %s64
      %s65 = sphi 0, %s62
      %s66 = sphi 0, %s65
      %s82 = sphi 0, %s66
      %s86 = sphi 0, %s86
      %s88 = sphi 0, %s86
      %s89 = sphi 0, %s88
      %s103 = sphi 0, %s89
      %s107 = sphi 0, %s107
      %s109 = sphi 0, %s107
      %s110 = sphi 0, %s109
      %s124 = sphi 0, %s110
      %s128 = sphi 0, %s128
      %s130 = sphi 0, %s128
      %s131 = sphi 0, %s130
      %s145 = sphi 0, %s131
      %s149 = sphi 0, %s149
      %s151 = sphi 0, %s149
      %s152 = sphi 0, %s151
      %s166 = sphi 0, %s152
      %s172 = sphi 0, %s174
      %s175 = sphi 0, %s172
      %s176 = sphi 0, %s175
      %s192 = sphi 0, %s176
    $region4: #{tpu_custom_call.1} parent=1 // loop_header_branch
      %17 = sbr.rel (%p15) target = $region8
    $region5: #{tpu_custom_call.1} parent=1 // loop_body
      %s19 = ssub.s32 %s14, 1
      %s20 = ssub.s32 %s14, 2
      %s27 = sadd.s32 1, %s22
      %p28 = scmp.ge.s32.totalorder %s27, 4
      %s29 = scalar_select %p28, 0, %s27
      %s30 = sadd.s32 1, %s21
      %s31 = scalar_select %p28, %s30, %s21
      %p32 = scmp.ge.s32.totalorder %s31, 1
      %s33 = scalar_select %p32, 0, %s31
      %s34 = ssub.s32 %s21, %s33
      %p35 = scmp.eq.s32.totalorder %s34, 0
      %s37 = sadd.s32 %s36, 1
      %s38 = scalar_select %p35, %s36, %s37
      %p41 = pneg %p35
      %p42 = scmp.eq.s32.totalorder %s14, 3
      %p43 = por %p41, %p42
      %p44 = scmp.ne.s32.totalorder %s36, %s39
      %p45 = scmp.eq.s32.totalorder %s14, 0
      %p46 = por %p44, %p45
      %p47 = scmp.ne.s32.totalorder %s36, %s39
      %p48 = scmp.eq.s32.totalorder %s19, 3
      %p49 = por %p47, %p48
      %p50 = scmp.ne.s32.totalorder %s39, %s40
      %p51 = scmp.eq.s32.totalorder %s19, 0
      %p52 = por %p50, %p51
      %p53 = scmp.ne.s32.totalorder %s39, %s40
      %p54 = scmp.eq.s32.totalorder %s20, 3
      %p55 = por %p53, %p54
      %p57 = scmp.ne.s32.totalorder %s40, %s56
      %p58 = scmp.eq.s32.totalorder %s20, 0
      %p59 = por %p57, %p58
      %s60 = ssub.s32 %s21, %s33
      %p61 = scmp.eq.s32.totalorder %s60, 0
      %s63 = sadd.s32 %s62, 1
      %s64 = scalar_select %p61, %s62, %s63
      %p67 = pneg %p61
      %p68 = scmp.eq.s32.totalorder %s14, 3
      %p69 = por %p67, %p68
      %p70 = scmp.ne.s32.totalorder %s62, %s65
      %p71 = scmp.eq.s32.totalorder %s14, 0
      %p72 = por %p70, %p71
      %p73 = scmp.ne.s32.totalorder %s62, %s65
      %p74 = scmp.eq.s32.totalorder %s19, 3
      %p75 = por %p73, %p74
      %p76 = scmp.ne.s32.totalorder %s65, %s66
      %p77 = scmp.eq.s32.totalorder %s19, 0
      %p78 = por %p76, %p77
      %p79 = scmp.ne.s32.totalorder %s65, %s66
      %p80 = scmp.eq.s32.totalorder %s20, 3
      %p81 = por %p79, %p80
      %p83 = scmp.ne.s32.totalorder %s66, %s82
      %p84 = scmp.eq.s32.totalorder %s20, 0
      %p85 = por %p83, %p84
      %s87 = sadd.s32 %s86, 1
      %p90 = scmp.eq.s32.totalorder %s14, 3
      %p91 = scmp.ne.s32.totalorder %s86, %s88
      %p92 = scmp.eq.s32.totalorder %s14, 0
      %p93 = por %p91, %p92
      %p94 = scmp.ne.s32.totalorder %s86, %s88
      %p95 = scmp.eq.s32.totalorder %s19, 3
      %p96 = por %p94, %p95
      %p97 = scmp.ne.s32.totalorder %s88, %s89
      %p98 = scmp.eq.s32.totalorder %s19, 0
      %p99 = por %p97, %p98
      %p100 = scmp.ne.s32.totalorder %s88, %s89
      %p101 = scmp.eq.s32.totalorder %s20, 3
      %p102 = por %p100, %p101
      %p104 = scmp.ne.s32.totalorder %s89, %s103
      %p105 = scmp.eq.s32.totalorder %s20, 0
      %p106 = por %p104, %p105
      %s108 = sadd.s32 %s107, 1
      %p111 = scmp.eq.s32.totalorder %s14, 3
      %p112 = scmp.ne.s32.totalorder %s107, %s109
      %p113 = scmp.eq.s32.totalorder %s14, 0
      %p114 = por %p112, %p113
      %p115 = scmp.ne.s32.totalorder %s107, %s109
      %p116 = scmp.eq.s32.totalorder %s19, 3
      %p117 = por %p115, %p116
      %p118 = scmp.ne.s32.totalorder %s109, %s110
      %p119 = scmp.eq.s32.totalorder %s19, 0
      %p120 = por %p118, %p119
      %p121 = scmp.ne.s32.totalorder %s109, %s110
      %p122 = scmp.eq.s32.totalorder %s20, 3
      %p123 = por %p121, %p122
      %p125 = scmp.ne.s32.totalorder %s110, %s124
      %p126 = scmp.eq.s32.totalorder %s20, 0
      %p127 = por %p125, %p126
      %s129 = sadd.s32 %s128, 1
      %p132 = scmp.eq.s32.totalorder %s14, 3
      %p133 = scmp.ne.s32.totalorder %s128, %s130
      %p134 = scmp.eq.s32.totalorder %s14, 0
      %p135 = por %p133, %p134
      %p136 = scmp.ne.s32.totalorder %s128, %s130
      %p137 = scmp.eq.s32.totalorder %s19, 3
      %p138 = por %p136, %p137
      %p139 = scmp.ne.s32.totalorder %s130, %s131
      %p140 = scmp.eq.s32.totalorder %s19, 0
      %p141 = por %p139, %p140
      %p142 = scmp.ne.s32.totalorder %s130, %s131
      %p143 = scmp.eq.s32.totalorder %s20, 3
      %p144 = por %p142, %p143
      %p146 = scmp.ne.s32.totalorder %s131, %s145
      %p147 = scmp.eq.s32.totalorder %s20, 0
      %p148 = por %p146, %p147
      %s150 = sadd.s32 %s149, 1
      %p153 = scmp.eq.s32.totalorder %s14, 3
      %p154 = scmp.ne.s32.totalorder %s149, %s151
      %p155 = scmp.eq.s32.totalorder %s14, 0
      %p156 = por %p154, %p155
      %p157 = scmp.ne.s32.totalorder %s149, %s151
      %p158 = scmp.eq.s32.totalorder %s19, 3
      %p159 = por %p157, %p158
      %p160 = scmp.ne.s32.totalorder %s151, %s152
      %p161 = scmp.eq.s32.totalorder %s19, 0
      %p162 = por %p160, %p161
      %p163 = scmp.ne.s32.totalorder %s151, %s152
      %p164 = scmp.eq.s32.totalorder %s20, 3
      %p165 = por %p163, %p164
      %p167 = scmp.ne.s32.totalorder %s152, %s166
      %p168 = scmp.eq.s32.totalorder %s20, 0
      %p169 = por %p167, %p168
      %s170 = ssub.s32 %s21, %s33
      %p171 = scmp.eq.s32.totalorder %s170, 0
      %s173 = sadd.s32 %s172, 1
      %s174 = scalar_select %p171, %s172, %s173
      %p177 = pneg %p171
      %p178 = scmp.eq.s32.totalorder %s14, 3
      %p179 = por %p177, %p178
      %p180 = scmp.ne.s32.totalorder %s172, %s175
      %p181 = scmp.eq.s32.totalorder %s14, 0
      %p182 = por %p180, %p181
      %p183 = scmp.ne.s32.totalorder %s172, %s175
      %p184 = scmp.eq.s32.totalorder %s19, 3
      %p185 = por %p183, %p184
      %p186 = scmp.ne.s32.totalorder %s175, %s176
      %p187 = scmp.eq.s32.totalorder %s19, 0
      %p188 = por %p186, %p187
      %p189 = scmp.ne.s32.totalorder %s175, %s176
      %p190 = scmp.eq.s32.totalorder %s20, 3
      %p191 = por %p189, %p190
      %p193 = scmp.ne.s32.totalorder %s176, %s192
      %p194 = scmp.eq.s32.totalorder %s20, 0
      %p195 = por %p193, %p194
      %p196 = scmp.le.s32.totalorder 1, %s14
      %p197 = scmp.lt.s32.totalorder %s14, 5
      %p198 = pnand %p196, %p197
      %p199 = pneg %p198
      // Predicated region
      $region9: #{tpu_custom_call.1} parent=5 // pred_check
        _
      $region10: #{tpu_custom_call.1} parent=5 // pred_check_branch
        %201 = sbr.rel (%p198) target = $region12
      $region11: #{tpu_custom_call.1} parent=5 // pred_region
        %s202 = ssub.s32 %s14, 1
        // Predicated region
        $region13: #{tpu_custom_call.1} parent=11 // pred_check
          %p203 = pneg %p52
        $region14: #{tpu_custom_call.1} parent=11 // pred_check_branch
          %205 = sbr.rel (%p203) target = $region16
        $region15: #{tpu_custom_call.1} parent=11 // pred_region
          %p206 = scmp.lt.s32.totalorder %s23, 0
          %s207 = scalar_select %p206, %s23, 0
          %s208 = smul.addr %s207, 8
          %s209 = scalar_lea.vmem %s0, %s208
        $region16: #{tpu_custom_call.1} parent=11 // pred_fallthru
          _
        // Predicated region
        $region17: #{tpu_custom_call.1} parent=11 // pred_check
          %p210 = pneg %p78
        $region18: #{tpu_custom_call.1} parent=11 // pred_check_branch
          %212 = sbr.rel (%p210) target = $region20
        $region19: #{tpu_custom_call.1} parent=11 // pred_region
          %p213 = scmp.lt.s32.totalorder %s23, 0
          %s214 = scalar_select %p213, %s23, 0
          %s215 = smul.addr %s214, 8
          %s216 = scalar_lea.vmem %s1, %s215
        $region20: #{tpu_custom_call.1} parent=11 // pred_fallthru
          _
        // Predicated region
        $region21: #{tpu_custom_call.1} parent=11 // pred_check
          %p217 = pneg %p99
        $region22: #{tpu_custom_call.1} parent=11 // pred_check_branch
          %219 = sbr.rel (%p217) target = $region24
        $region23: #{tpu_custom_call.1} parent=11 // pred_region
          _
        $region24: #{tpu_custom_call.1} parent=11 // pred_fallthru
          _
        // Predicated region
        $region25: #{tpu_custom_call.1} parent=11 // pred_check
          %p220 = pneg %p120
        $region26: #{tpu_custom_call.1} parent=11 // pred_check_branch
          %222 = sbr.rel (%p220) target = $region28
        $region27: #{tpu_custom_call.1} parent=11 // pred_region
          _
        $region28: #{tpu_custom_call.1} parent=11 // pred_fallthru
          _
        // Predicated region
        $region29: #{tpu_custom_call.1} parent=11 // pred_check
          %p223 = pneg %p141
        $region30: #{tpu_custom_call.1} parent=11 // pred_check_branch
          %225 = sbr.rel (%p223) target = $region32
        $region31: #{tpu_custom_call.1} parent=11 // pred_region
          _
        $region32: #{tpu_custom_call.1} parent=11 // pred_fallthru
          _
        // Predicated region
        $region33: #{tpu_custom_call.1} parent=11 // pred_check
          %p226 = pneg %p162
        $region34: #{tpu_custom_call.1} parent=11 // pred_check_branch
          %228 = sbr.rel (%p226) target = $region36
        $region35: #{tpu_custom_call.1} parent=11 // pred_region
          _
        $region36: #{tpu_custom_call.1} parent=11 // pred_fallthru
          _
      $region12: #{tpu_custom_call.1} parent=5 // pred_fallthru
        _
      %p229 = scmp.lt.s32.totalorder %s14, 4
      // Predicated region
      $region37: #{tpu_custom_call.1} parent=5 // pred_check
        %p230 = pneg %p229
      $region38: #{tpu_custom_call.1} parent=5 // pred_check_branch
        %232 = sbr.rel (%p230) target = $region40
      $region39: #{tpu_custom_call.1} parent=5 // pred_region
        _
      $region40: #{tpu_custom_call.1} parent=5 // pred_fallthru
        _
      %p233 = scmp.le.s32.totalorder 1, %s14
      %p234 = scmp.lt.s32.totalorder %s14, 5
      %p235 = pnand %p233, %p234
      %p236 = pneg %p235
      // Predicated region
      $region41: #{tpu_custom_call.1} parent=5 // pred_check
        _
      $region42: #{tpu_custom_call.1} parent=5 // pred_check_branch
        %238 = sbr.rel (%p235) target = $region44
      $region43: #{tpu_custom_call.1} parent=5 // pred_region
        %s239 = ssub.s32 %s14, 1
        %p240 = scmp.lt.s32.totalorder %s23, 0
        %s241 = scalar_select %p240, %s23, 0
        %s242 = smul.addr %s241, 8
        %s243 = scalar_lea.vmem %s0, %s242
        %p244 = pneg %p52
        %p245 = pneg %p49
        %p246 = scmp.lt.s32.totalorder %s23, 0
        %s247 = scalar_select %p246, %s23, 0
        %s248 = smul.addr %s247, 8
        %s249 = scalar_lea.vmem %s1, %s248
        %p250 = pneg %p78
        %p251 = pneg %p75
        %p252 = pneg %p99
        %p253 = pneg %p96
        %p254 = pneg %p120
        %p255 = pneg %p117
        %p256 = pneg %p141
        %p257 = pneg %p138
        %p258 = pneg %p162
        %p259 = pneg %p159
        %p260 = pneg %p188
        %p261 = pneg %p185
        %p262 = scmp.lt.s32.totalorder %s23, 0
        %s263 = scalar_select %p262, %s23, 0
        %s264 = smul.addr %s263, 8
        %s265 = scalar_lea.vmem %s0, %s264
        %p266 = scmp.lt.s32.totalorder %s23, 0
        %s267 = scalar_select %p266, %s23, 0
        %s268 = smul.addr %s267, 8
        %s269 = scalar_lea.vmem %s1, %s268
        %p270 = scmp.eq.s32.totalorder %s24, 0
        // Predicated region
        $region45: #{tpu_custom_call.1} parent=43 // pred_check
          %p271 = pneg %p270
        $region46: #{tpu_custom_call.1} parent=43 // pred_check_branch
          %273 = sbr.rel (%p271) target = $region48
        $region47: #{tpu_custom_call.1} parent=43 // pred_region
          %274 = vst [vmem:[#allocation2] sm:$0x1] 0.0
        $region48: #{tpu_custom_call.1} parent=43 // pred_fallthru
          _
        %s275 = smul.u32 %s24, 256
        %s276 = scalar_lea.vmem %s2, %s275
        %v277 = vld [vmem:[%s276] sm:$0xff]
        %v278 = vld [vmem:[%s276 + $0x8] sm:$0xff]
        %v279 = vld [vmem:[%s276 + $0x10] sm:$0xff]
        %v280 = vld [vmem:[%s276 + $0x18] sm:$0xff]
        %v281 = vld [vmem:[%s276 + $0x20] sm:$0xff]
        %v282 = vld [vmem:[%s276 + $0x28] sm:$0xff]
        %v283 = vld [vmem:[%s276 + $0x30] sm:$0xff]
        %v284 = vld [vmem:[%s276 + $0x38] sm:$0xff]
        %v285 = vld [vmem:[%s276 + $0x40] sm:$0xff]
        %v286 = vld [vmem:[%s276 + $0x48] sm:$0xff]
        %v287 = vld [vmem:[%s276 + $0x50] sm:$0xff]
        %v288 = vld [vmem:[%s276 + $0x58] sm:$0xff]
        %v289 = vld [vmem:[%s276 + $0x60] sm:$0xff]
        %v290 = vld [vmem:[%s276 + $0x68] sm:$0xff]
        %v291 = vld [vmem:[%s276 + $0x70] sm:$0xff]
        %v292 = vld [vmem:[%s276 + $0x78] sm:$0xff]
        %v293 = vld [vmem:[%s276 + $0x80] sm:$0xff]
        %v294 = vld [vmem:[%s276 + $0x88] sm:$0xff]
        %v295 = vld [vmem:[%s276 + $0x90] sm:$0xff]
        %v296 = vld [vmem:[%s276 + $0x98] sm:$0xff]
        %v297 = vld [vmem:[%s276 + $0xa0] sm:$0xff]
        %v298 = vld [vmem:[%s276 + $0xa8] sm:$0xff]
        %v299 = vld [vmem:[%s276 + $0xb0] sm:$0xff]
        %v300 = vld [vmem:[%s276 + $0xb8] sm:$0xff]
        %v301 = vld [vmem:[%s276 + $0xc0] sm:$0xff]
        %v302 = vld [vmem:[%s276 + $0xc8] sm:$0xff]
        %v303 = vld [vmem:[%s276 + $0xd0] sm:$0xff]
        %v304 = vld [vmem:[%s276 + $0xd8] sm:$0xff]
        %v305 = vld [vmem:[%s276 + $0xe0] sm:$0xff]
        %v306 = vld [vmem:[%s276 + $0xe8] sm:$0xff]
        %v307 = vld [vmem:[%s276 + $0xf0] sm:$0xff]
        %v308 = vld [vmem:[%s276 + $0xf8] sm:$0xff]
        %v309 = vld [vmem:[%s265] sm:$0xff]
        %v310 = vld [vmem:[%s265 + $0x8] sm:$0xff]
        %v311 = vld [vmem:[%s265 + $0x10] sm:$0xff]
        %v312 = vld [vmem:[%s265 + $0x18] sm:$0xff]
        %vm313 = vcmask 261120
        %v315 = vsel %vm313, %v277, 0
        %v318 = vsel %vm313, %v278, 0
        %v321 = vsel %vm313, %v279, 0
        %v324 = vsel %vm313, %v280, 0
        %v327 = vsel %vm313, %v281, 0
        %v330 = vsel %vm313, %v282, 0
        %v333 = vsel %vm313, %v283, 0
        %v336 = vsel %vm313, %v284, 0
        %v339 = vsel %vm313, %v285, 0
        %v342 = vsel %vm313, %v286, 0
        %v345 = vsel %vm313, %v287, 0
        %v348 = vsel %vm313, %v288, 0
        %v351 = vsel %vm313, %v289, 0
        %v354 = vsel %vm313, %v290, 0
        %v357 = vsel %vm313, %v291, 0
        %v360 = vsel %vm313, %v292, 0
        %v363 = vsel %vm313, %v293, 0
        %v366 = vsel %vm313, %v294, 0
        %v369 = vsel %vm313, %v295, 0
        %v372 = vsel %vm313, %v296, 0
        %v375 = vsel %vm313, %v297, 0
        %v378 = vsel %vm313, %v298, 0
        %v381 = vsel %vm313, %v299, 0
        %v384 = vsel %vm313, %v300, 0
        %v387 = vsel %vm313, %v301, 0
        %v390 = vsel %vm313, %v302, 0
        %v393 = vsel %vm313, %v303, 0
        %v396 = vsel %vm313, %v304, 0
        %v399 = vsel %vm313, %v305, 0
        %v402 = vsel %vm313, %v306, 0
        %v405 = vsel %vm313, %v307, 0
        %v408 = vsel %vm313, %v308, 0
        %410 = vmatprep.subr.mxu0 0.0
        %411 = vmatpush1.msra.mxu0 %v309
        %412 = vmatprep.subr.mxu0 0.0
        %413 = vmatpush1.msra.mxu0 %v310
        %414 = vmatprep.subr.mxu0 0.0
        %415 = vmatpush1.msra.mxu0 %v311
        %416 = vmatprep.subr.mxu0 0.0
        %417 = vmatpush1.msra.mxu0 %v312
        %418 = vmatprep.subr.mxu0 0.0
        %419 = vmatpush1.msra.mxu0 0.0
        %420 = vmatprep.subr.mxu0 0.0
        %421 = vmatpush1.msra.mxu0 0.0
        %422 = vmatprep.subr.mxu0 0.0
        %423 = vmatpush1.msra.mxu0 0.0
        %424 = vmatprep.subr.mxu0 0.0
        %425 = vmatpush1.msra.mxu0 0.0
        %426 = vmatprep.subr.mxu0 0.0
        %427 = vmatpush1.msra.mxu0 0.0
        %428 = vmatprep.subr.mxu0 0.0
        %429 = vmatpush1.msra.mxu0 0.0
        %430 = vmatprep.subr.mxu0 0.0
        %431 = vmatpush1.msra.mxu0 0.0
        %432 = vmatprep.subr.mxu0 0.0
        %433 = vmatpush1.msra.mxu0 0.0
        %434 = vmatprep.subr.mxu0 0.0
        %435 = vmatpush1.msra.mxu0 0.0
        %436 = vmatprep.subr.mxu0 0.0
        %437 = vmatpush1.msra.mxu0 0.0
        %438 = vmatprep.subr.mxu0 0.0
        %439 = vmatpush1.msra.mxu0 0.0
        %440 = vmatprep.subr.mxu0 0.0
        %441 = vmatpush1.msra.mxu0 0.0
        %442 = vmatprep.subr.mxu0 0.0
        %443 = vmatpush1.msra.mxu0 0.0
        %444 = vmatprep.subr.mxu0 0.0
        %445 = vmatpush1.msra.mxu0 0.0
        %446 = vmatprep.subr.mxu0 0.0
        %447 = vmatpush1.msra.mxu0 0.0
        %448 = vmatprep.subr.mxu0 0.0
        %449 = vmatpush1.msra.mxu0 0.0
        %450 = vmatprep.subr.mxu0 0.0
        %451 = vmatpush1.msra.mxu0 0.0
        %452 = vmatprep.subr.mxu0 0.0
        %453 = vmatpush1.msra.mxu0 0.0
        %454 = vmatprep.subr.mxu0 0.0
        %455 = vmatpush1.msra.mxu0 0.0
        %456 = vmatprep.subr.mxu0 0.0
        %457 = vmatpush1.msra.mxu0 0.0
        %458 = vmatprep.subr.mxu0 0.0
        %459 = vmatpush1.msra.mxu0 0.0
        %460 = vmatprep.subr.mxu0 0.0
        %461 = vmatpush1.msra.mxu0 0.0
        %462 = vmatprep.subr.mxu0 0.0
        %463 = vmatpush1.msra.mxu0 0.0
        %464 = vmatprep.subr.mxu0 0.0
        %465 = vmatpush1.msra.mxu0 0.0
        %466 = vmatprep.subr.mxu0 0.0
        %467 = vmatpush1.msra.mxu0 0.0
        %468 = vmatprep.subr.mxu0 0.0
        %469 = vmatpush1.msra.mxu0 0.0
        %470 = vmatprep.subr.mxu0 0.0
        %471 = vmatpush1.msra.mxu0 0.0
        %472 = vmatprep.subr.mxu0 0.0
        %473 = vmatpush1.msra.mxu0 0.0
        %474 = vmatprep.mubr.f32.mxu0 0.0
        %475 = vmatmul.mubr.f32.gmra.mrb[0].mxu0 %v315
        %v476 = vpop.f32.mrb[0].mxu0
        %v477 = vadd.f32 0.0, %v476
        %v478 = vpop.f32.mrb[0].mxu0
        %479 = vmatprep.mubr.f32.mxu0 0.0
        %480 = vmatmul.mubr.f32.gmra.mrb[0].mxu0 %v318
        %v481 = vpop.f32.mrb[0].mxu0
        %v482 = vadd.f32 0.0, %v481
        %v483 = vpop.f32.mrb[0].mxu0
        %484 = vmatprep.mubr.f32.mxu0 0.0
        %485 = vmatmul.mubr.f32.gmra.mrb[0].mxu0 %v321
        %v486 = vpop.f32.mrb[0].mxu0
        %v487 = vadd.f32 0.0, %v486
        %v488 = vpop.f32.mrb[0].mxu0
        %489 = vmatprep.mubr.f32.mxu0 0.0
        %490 = vmatmul.mubr.f32.gmra.mrb[0].mxu0 %v324
        %v491 = vpop.f32.mrb[0].mxu0
        %v492 = vadd.f32 0.0, %v491
        %v493 = vpop.f32.mrb[0].mxu0
        %494 = vmatprep.mubr.f32.mxu0 0.0
        %495 = vmatmul.mubr.f32.gmra.mrb[0].mxu0 %v327
        %v496 = vpop.f32.mrb[0].mxu0
        %v497 = vadd.f32 0.0, %v496
        %v498 = vpop.f32.mrb[0].mxu0
        %499 = vmatprep.mubr.f32.mxu0 0.0
        %500 = vmatmul.mubr.f32.gmra.mrb[0].mxu0 %v330
        %v501 = vpop.f32.mrb[0].mxu0
        %v502 = vadd.f32 0.0, %v501
        %v503 = vpop.f32.mrb[0].mxu0
        %504 = vmatprep.mubr.f32.mxu0 0.0
        %505 = vmatmul.mubr.f32.gmra.mrb[0].mxu0 %v333
        %v506 = vpop.f32.mrb[0].mxu0
        %v507 = vadd.f32 0.0, %v506
        %v508 = vpop.f32.mrb[0].mxu0
        %509 = vmatprep.mubr.f32.mxu0 0.0
        %510 = vmatmul.mubr.f32.gmra.mrb[0].mxu0 %v336
        %v511 = vpop.f32.mrb[0].mxu0
        %v512 = vadd.f32 0.0, %v511
        %v513 = vpop.f32.mrb[0].mxu0
        %514 = vmatprep.mubr.f32.mxu0 0.0
        %515 = vmatmul.mubr.f32.gmra.mrb[0].mxu0 %v339
        %v516 = vpop.f32.mrb[0].mxu0
        %v517 = vadd.f32 0.0, %v516
        %v518 = vpop.f32.mrb[0].mxu0
        %519 = vmatprep.mubr.f32.mxu0 0.0
        %520 = vmatmul.mubr.f32.gmra.mrb[0].mxu0 %v342
        %v521 = vpop.f32.mrb[0].mxu0
        %v522 = vadd.f32 0.0, %v521
        %v523 = vpop.f32.mrb[0].mxu0
        %524 = vmatprep.mubr.f32.mxu0 0.0
        %525 = vmatmul.mubr.f32.gmra.mrb[0].mxu0 %v345
        %v526 = vpop.f32.mrb[0].mxu0
        %v527 = vadd.f32 0.0, %v526
        %v528 = vpop.f32.mrb[0].mxu0
        %529 = vmatprep.mubr.f32.mxu0 0.0
        %530 = vmatmul.mubr.f32.gmra.mrb[0].mxu0 %v348
        %v531 = vpop.f32.mrb[0].mxu0
        %v532 = vadd.f32 0.0, %v531
        %v533 = vpop.f32.mrb[0].mxu0
        %534 = vmatprep.mubr.f32.mxu0 0.0
        %535 = vmatmul.mubr.f32.gmra.mrb[0].mxu0 %v351
        %v536 = vpop.f32.mrb[0].mxu0
        %v537 = vadd.f32 0.0, %v536
        %v538 = vpop.f32.mrb[0].mxu0
        %539 = vmatprep.mubr.f32.mxu0 0.0
        %540 = vmatmul.mubr.f32.gmra.mrb[0].mxu0 %v354
        %v541 = vpop.f32.mrb[0].mxu0
        %v542 = vadd.f32 0.0, %v541
        %v543 = vpop.f32.mrb[0].mxu0
        %544 = vmatprep.mubr.f32.mxu0 0.0
        %545 = vmatmul.mubr.f32.gmra.mrb[0].mxu0 %v357
        %v546 = vpop.f32.mrb[0].mxu0
        %v547 = vadd.f32 0.0, %v546
        %v548 = vpop.f32.mrb[0].mxu0
        %549 = vmatprep.mubr.f32.mxu0 0.0
        %550 = vmatmul.mubr.f32.gmra.mrb[0].mxu0 %v360
        %v551 = vpop.f32.mrb[0].mxu0
        %v552 = vadd.f32 0.0, %v551
        %v553 = vpop.f32.mrb[0].mxu0
        %554 = vmatprep.mubr.f32.mxu0 0.0
        %555 = vmatmul.mubr.f32.gmra.mrb[0].mxu0 %v363
        %v556 = vpop.f32.mrb[0].mxu0
        %v557 = vadd.f32 0.0, %v556
        %v558 = vpop.f32.mrb[0].mxu0
        %559 = vmatprep.mubr.f32.mxu0 0.0
        %560 = vmatmul.mubr.f32.gmra.mrb[0].mxu0 %v366
        %v561 = vpop.f32.mrb[0].mxu0
        %v562 = vadd.f32 0.0, %v561
        %v563 = vpop.f32.mrb[0].mxu0
        %564 = vmatprep.mubr.f32.mxu0 0.0
        %565 = vmatmul.mubr.f32.gmra.mrb[0].mxu0 %v369
        %v566 = vpop.f32.mrb[0].mxu0
        %v567 = vadd.f32 0.0, %v566
        %v568 = vpop.f32.mrb[0].mxu0
        %569 = vmatprep.mubr.f32.mxu0 0.0
        %570 = vmatmul.mubr.f32.gmra.mrb[0].mxu0 %v372
        %v571 = vpop.f32.mrb[0].mxu0
        %v572 = vadd.f32 0.0, %v571
        %v573 = vpop.f32.mrb[0].mxu0
        %574 = vmatprep.mubr.f32.mxu0 0.0
        %575 = vmatmul.mubr.f32.gmra.mrb[0].mxu0 %v375
        %v576 = vpop.f32.mrb[0].mxu0
        %v577 = vadd.f32 0.0, %v576
        %v578 = vpop.f32.mrb[0].mxu0
        %579 = vmatprep.mubr.f32.mxu0 0.0
        %580 = vmatmul.mubr.f32.gmra.mrb[0].mxu0 %v378
        %v581 = vpop.f32.mrb[0].mxu0
        %v582 = vadd.f32 0.0, %v581
        %v583 = vpop.f32.mrb[0].mxu0
        %584 = vmatprep.mubr.f32.mxu0 0.0
        %585 = vmatmul.mubr.f32.gmra.mrb[0].mxu0 %v381
        %v586 = vpop.f32.mrb[0].mxu0
        %v587 = vadd.f32 0.0, %v586
        %v588 = vpop.f32.mrb[0].mxu0
        %589 = vmatprep.mubr.f32.mxu0 0.0
        %590 = vmatmul.mubr.f32.gmra.mrb[0].mxu0 %v384
        %v591 = vpop.f32.mrb[0].mxu0
        %v592 = vadd.f32 0.0, %v591
        %v593 = vpop.f32.mrb[0].mxu0
        %594 = vmatprep.mubr.f32.mxu0 0.0
        %595 = vmatmul.mubr.f32.gmra.mrb[0].mxu0 %v387
        %v596 = vpop.f32.mrb[0].mxu0
        %v597 = vadd.f32 0.0, %v596
        %v598 = vpop.f32.mrb[0].mxu0
        %599 = vmatprep.mubr.f32.mxu0 0.0
        %600 = vmatmul.mubr.f32.gmra.mrb[0].mxu0 %v390
        %v601 = vpop.f32.mrb[0].mxu0
        %v602 = vadd.f32 0.0, %v601
        %v603 = vpop.f32.mrb[0].mxu0
        %604 = vmatprep.mubr.f32.mxu0 0.0
        %605 = vmatmul.mubr.f32.gmra.mrb[0].mxu0 %v393
        %v606 = vpop.f32.mrb[0].mxu0
        %v607 = vadd.f32 0.0, %v606
        %v608 = vpop.f32.mrb[0].mxu0
        %609 = vmatprep.mubr.f32.mxu0 0.0
        %610 = vmatmul.mubr.f32.gmra.mrb[0].mxu0 %v396
        %v611 = vpop.f32.mrb[0].mxu0
        %v612 = vadd.f32 0.0, %v611
        %v613 = vpop.f32.mrb[0].mxu0
        %614 = vmatprep.mubr.f32.mxu0 0.0
        %615 = vmatmul.mubr.f32.gmra.mrb[0].mxu0 %v399
        %v616 = vpop.f32.mrb[0].mxu0
        %v617 = vadd.f32 0.0, %v616
        %v618 = vpop.f32.mrb[0].mxu0
        %619 = vmatprep.mubr.f32.mxu0 0.0
        %620 = vmatmul.mubr.f32.gmra.mrb[0].mxu0 %v402
        %v621 = vpop.f32.mrb[0].mxu0
        %v622 = vadd.f32 0.0, %v621
        %v623 = vpop.f32.mrb[0].mxu0
        %624 = vmatprep.mubr.f32.mxu0 0.0
        %625 = vmatmul.mubr.f32.gmra.mrb[0].mxu0 %v405
        %v626 = vpop.f32.mrb[0].mxu0
        %v627 = vadd.f32 0.0, %v626
        %v628 = vpop.f32.mrb[0].mxu0
        %629 = vmatprep.mubr.f32.mxu0 0.0
        %630 = vmatmul.mubr.f32.gmra.mrb[0].mxu0 %v408
        %v631 = vpop.f32.mrb[0].mxu0
        %v632 = vadd.f32 0.0, %v631
        %v633 = vpop.f32.mrb[0].mxu0
        %634 = vdwg.mxu0
        %v635 = vld [vmem:[%s269] sm:$0xff]
        %v636 = vld [vmem:[%s269 + $0x8] sm:$0xff]
        %v637 = vld [vmem:[%s269 + $0x10] sm:$0xff]
        %v638 = vld [vmem:[%s269 + $0x18] sm:$0xff]
        %v639 = vmul.f32 %v477, %v635
        %v640 = vmul.f32 %v482, %v636
        %v641 = vmul.f32 %v487, %v637
        %v642 = vmul.f32 %v492, %v638
        %v643 = vmul.f32 %v497, %v635
        %v644 = vmul.f32 %v502, %v636
        %v645 = vmul.f32 %v507, %v637
        %v646 = vmul.f32 %v512, %v638
        %v647 = vmul.f32 %v517, %v635
        %v648 = vmul.f32 %v522, %v636
        %v649 = vmul.f32 %v527, %v637
        %v650 = vmul.f32 %v532, %v638
        %v651 = vmul.f32 %v537, %v635
        %v652 = vmul.f32 %v542, %v636
        %v653 = vmul.f32 %v547, %v637
        %v654 = vmul.f32 %v552, %v638
        %v655 = vmul.f32 %v557, %v635
        %v656 = vmul.f32 %v562, %v636
        %v657 = vmul.f32 %v567, %v637
        %v658 = vmul.f32 %v572, %v638
        %v659 = vmul.f32 %v577, %v635
        %v660 = vmul.f32 %v582, %v636
        %v661 = vmul.f32 %v587, %v637
        %v662 = vmul.f32 %v592, %v638
        %v663 = vmul.f32 %v597, %v635
        %v664 = vmul.f32 %v602, %v636
        %v665 = vmul.f32 %v607, %v637
        %v666 = vmul.f32 %v612, %v638
        %v667 = vmul.f32 %v617, %v635
        %v668 = vmul.f32 %v622, %v636
        %v669 = vmul.f32 %v627, %v637
        %v670 = vmul.f32 %v632, %v638
        %v671 = vadd.f32 %v639, %v640
        %v672 = vadd.f32 %v671, %v641
        %v673 = vadd.f32 %v672, %v642
        %v674 = vrot.slane %v673, 4
        %v675 = vadd.f32 %v673, %v674
        %v676 = vrot.slane %v675, 2
        %v677 = vadd.f32 %v675, %v676
        %v678 = vrot.slane %v677, 1
        %v679 = vadd.f32 %v677, %v678
        %v680 = vadd.f32 %v643, %v644
        %v681 = vadd.f32 %v680, %v645
        %v682 = vadd.f32 %v681, %v646
        %v683 = vrot.slane %v682, 4
        %v684 = vadd.f32 %v682, %v683
        %v685 = vrot.slane %v684, 2
        %v686 = vadd.f32 %v684, %v685
        %v687 = vrot.slane %v686, 1
        %v688 = vadd.f32 %v686, %v687
        %v689 = vadd.f32 %v647, %v648
        %v690 = vadd.f32 %v689, %v649
        %v691 = vadd.f32 %v690, %v650
        %v692 = vrot.slane %v691, 4
        %v693 = vadd.f32 %v691, %v692
        %v694 = vrot.slane %v693, 2
        %v695 = vadd.f32 %v693, %v694
        %v696 = vrot.slane %v695, 1
        %v697 = vadd.f32 %v695, %v696
        %v698 = vadd.f32 %v651, %v652
        %v699 = vadd.f32 %v698, %v653
        %v700 = vadd.f32 %v699, %v654
        %v701 = vrot.slane %v700, 4
        %v702 = vadd.f32 %v700, %v701
        %v703 = vrot.slane %v702, 2
        %v704 = vadd.f32 %v702, %v703
        %v705 = vrot.slane %v704, 1
        %v706 = vadd.f32 %v704, %v705
        %v707 = vadd.f32 %v655, %v656
        %v708 = vadd.f32 %v707, %v657
        %v709 = vadd.f32 %v708, %v658
        %v710 = vrot.slane %v709, 4
        %v711 = vadd.f32 %v709, %v710
        %v712 = vrot.slane %v711, 2
        %v713 = vadd.f32 %v711, %v712
        %v714 = vrot.slane %v713, 1
        %v715 = vadd.f32 %v713, %v714
        %v716 = vadd.f32 %v659, %v660
        %v717 = vadd.f32 %v716, %v661
        %v718 = vadd.f32 %v717, %v662
        %v719 = vrot.slane %v718, 4
        %v720 = vadd.f32 %v718, %v719
        %v721 = vrot.slane %v720, 2
        %v722 = vadd.f32 %v720, %v721
        %v723 = vrot.slane %v722, 1
        %v724 = vadd.f32 %v722, %v723
        %v725 = vadd.f32 %v663, %v664
        %v726 = vadd.f32 %v725, %v665
        %v727 = vadd.f32 %v726, %v666
        %v728 = vrot.slane %v727, 4
        %v729 = vadd.f32 %v727, %v728
        %v730 = vrot.slane %v729, 2
        %v731 = vadd.f32 %v729, %v730
        %v732 = vrot.slane %v731, 1
        %v733 = vadd.f32 %v731, %v732
        %v734 = vadd.f32 %v667, %v668
        %v735 = vadd.f32 %v734, %v669
        %v736 = vadd.f32 %v735, %v670
        %v737 = vrot.slane %v736, 4
        %v738 = vadd.f32 %v736, %v737
        %v739 = vrot.slane %v738, 2
        %v740 = vadd.f32 %v738, %v739
        %v741 = vrot.slane %v740, 1
        %v742 = vadd.f32 %v740, %v741
        %s743 = smul.u32 %s24, 8
        %s744 = scalar_lea.vmem %s3, %s743
        %v745 = vld [vmem:[%s744] sm:$0xff]
        %747 = vset.pattern.permute.xlu0 0
        %748 = vperm.xlu0 %747, %v745
        %v749 = vpop.permute.xlu0 %748
        %v750 = vrot.slane %v749, 1
        %v751 = vrot.slane %v749, 2
        %v752 = vrot.slane %v749, 3
        %v753 = vrot.slane %v749, 4
        %v754 = vrot.slane %v749, 5
        %v755 = vrot.slane %v749, 6
        %v756 = vrot.slane %v749, 7
        %v765 = vadd.f32 %v679, %v749
        %v766 = vadd.f32 %v688, %v750
        %v767 = vadd.f32 %v697, %v751
        %v768 = vadd.f32 %v706, %v752
        %v769 = vadd.f32 %v715, %v753
        %v770 = vadd.f32 %v724, %v754
        %v771 = vadd.f32 %v733, %v755
        %v772 = vadd.f32 %v742, %v756
        %v773 = vtanh.pop %v765
        %v774 = vtanh.pop %v766
        %v775 = vtanh.pop %v767
        %v776 = vtanh.pop %v768
        %v777 = vtanh.pop %v769
        %v778 = vtanh.pop %v770
        %v779 = vtanh.pop %v771
        %v780 = vtanh.pop %v772
        %v781 = vld [vmem:[#allocation2] sm:$0x1]
        %s782 = scalar_lea.vmem %s4, %s743
        %v783 = vld [vmem:[%s782] sm:$0xff]
        %785 = vset.pattern.permute.xlu0 0
        %786 = vperm.xlu0 %785, %v783
        %v787 = vpop.permute.xlu0 %786
        %v788 = vrot.slane %v787, 1
        %v789 = vrot.slane %v787, 2
        %v790 = vrot.slane %v787, 3
        %v791 = vrot.slane %v787, 4
        %v792 = vrot.slane %v787, 5
        %v793 = vrot.slane %v787, 6
        %v794 = vrot.slane %v787, 7
        %v803 = vmul.f32 %v773, %v787
        %v804 = vmul.f32 %v774, %v788
        %v805 = vmul.f32 %v775, %v789
        %v806 = vmul.f32 %v776, %v790
        %v807 = vmul.f32 %v777, %v791
        %v808 = vmul.f32 %v778, %v792
        %v809 = vmul.f32 %v779, %v793
        %v810 = vmul.f32 %v780, %v794
        %v819 = vrot.slane %v804, 7
        %vm820 = vcmask 1041409
        %v821 = vsel %vm820, %v819, %v803
        %v822 = vrot.slane %v805, 6
        %vm823 = vcmask 1042434
        %v824 = vsel %vm823, %v822, %v821
        %v825 = vrot.slane %v806, 5
        %vm826 = vcmask 1043459
        %v827 = vsel %vm826, %v825, %v824
        %v828 = vrot.slane %v807, 4
        %vm829 = vcmask 1044484
        %v830 = vsel %vm829, %v828, %v827
        %v831 = vrot.slane %v808, 3
        %vm832 = vcmask 1045509
        %v833 = vsel %vm832, %v831, %v830
        %v834 = vrot.slane %v809, 2
        %vm835 = vcmask 1046534
        %v836 = vsel %vm835, %v834, %v833
        %v837 = vrot.slane %v810, 1
        %vm838 = vcmask 1047559
        %v839 = vsel %vm838, %v837, %v836
        %v841 = vrot.slane %v839, 4
        %v842 = vadd.f32 %v839, %v841
        %v843 = vrot.slane %v842, 2
        %v844 = vadd.f32 %v842, %v843
        %v845 = vrot.slane %v844, 1
        %v846 = vadd.f32 %v844, %v845
        %v847 = vadd.f32 %v781, %v846
        %848 = vst [vmem:[#allocation2] sm:$0x1] %v847
        %p849 = scmp.eq.s32.totalorder %s24, 3
        // Predicated region
        $region49: #{tpu_custom_call.1} parent=43 // pred_check
          %p850 = pneg %p849
        $region50: #{tpu_custom_call.1} parent=43 // pred_check_branch
          %852 = sbr.rel (%p850) target = $region52
        $region51: #{tpu_custom_call.1} parent=43 // pred_region
          %v853 = vld [vmem:[#allocation2] sm:$0x1]
          %s854 = sld [smem:[#allocation3]]
          %v855 = vstv %s854
          %v856 = vadd.f32 %v853, %v855
          %857 = vst [vmem:[#allocation4] sm:$0x1] %v856
        $region52: #{tpu_custom_call.1} parent=43 // pred_fallthru
          _
        // Predicated region
        $region53: #{tpu_custom_call.1} parent=43 // pred_check
          %p858 = pneg %p185
        $region54: #{tpu_custom_call.1} parent=43 // pred_check_branch
          %860 = sbr.rel (%p858) target = $region56
        $region55: #{tpu_custom_call.1} parent=43 // pred_region
          %s862 = ssub.s32 16, 16
          %863 = vsyncadd [#allocation5], %s862
          %s864 = smul.addr %s23, 16
          %s865 = scalar_lea.hbm %s6, %s864
          %s867 = sshll.u32 [#allocation4], 4
          %s868 = int_to_ptr.vmem [resolvable:$true] %s867
          %870 = dma.vmem_to_hbm [thread:$0]  %s868, 16, %s865, [#allocation5]
        $region56: #{tpu_custom_call.1} parent=43 // pred_fallthru
          _
        // Predicated region
        $region57: #{tpu_custom_call.1} parent=43 // pred_check
          %p871 = pneg %p185
        $region58: #{tpu_custom_call.1} parent=43 // pred_check_branch
          %873 = sbr.rel (%p871) target = $region60
        $region59: #{tpu_custom_call.1} parent=43 // pred_region
          %874 = dma.done [#allocation5], 16
        $region60: #{tpu_custom_call.1} parent=43 // pred_fallthru
          _
      $region44: #{tpu_custom_call.1} parent=5 // pred_fallthru
        _
      %p875 = scmp.le.s32.totalorder 2, %s14
      // Predicated region
      $region61: #{tpu_custom_call.1} parent=5 // pred_check
        %p876 = pneg %p875
      $region62: #{tpu_custom_call.1} parent=5 // pred_check_branch
        %878 = sbr.rel (%p876) target = $region64
      $region63: #{tpu_custom_call.1} parent=5 // pred_region
        %s879 = ssub.s32 %s14, 2
      $region64: #{tpu_custom_call.1} parent=5 // pred_fallthru
        _
    $region6: #{tpu_custom_call.1} parent=1 // loop_footer
      %s18 = sadd.s32 1, %s14
    $region7: #{tpu_custom_call.1} parent=1 // loop_footer_branch
      %13 = sbr.rel target = $region3
    $region8: #{tpu_custom_call.1} parent=1 // loop_exit
      _
    %880 = vsyncpa [#allocation5], 1
    %s881 = scalar_lea.sflag [#allocation5], 1
    %882 = vsyncpa %s881, 1

</llo_original>
